<compile_context>
chip_gen: v6e
topology: v6e:2x2x1
jax: 0.10.0
libtpu: 0.0.40
codegen_flags: <defaults>
</compile_context>

<pallas_src>
import functools

import jax
import jax.numpy as jnp
from jax.experimental import pallas as pl
from jax.experimental.pallas import tpu as pltpu  # noqa: F401  (single-shot form: no TPU-specific params required)


def _rnn_cell_kernel(xh_ref, w_ref, b_ref, o_ref, *, nonlinearity):
    # One fused MXU matmul (bf16 operands, f32 accumulate), then f32 bias add
    # and f32 activation (tanh -> EUP, relu -> VPU).  Everything is a single
    # VMEM block, so no grid / accumulator is needed.
    pre = (
        jnp.dot(xh_ref[...], w_ref[...], preferred_element_type=jnp.float32)
        + b_ref[...]
    )
    if nonlinearity == "tanh":
        act = jnp.tanh(pre)
    else:
        act = jnp.maximum(pre, 0.0)
    o_ref[...] = act.astype(o_ref.dtype)


def prepare_rnn_cell_params(w_x2h, b_x2h, w_h2h, b_h2h, *, compute_dtype=jnp.bfloat16):
    """One-time (loop-invariant) parameter preparation.

    w_*: (H, I) PyTorch nn.Linear layout, b_*: (H,).
    Returns:
      w_fused: (2I, H) stacked [Wx^T; Wh^T], cast to `compute_dtype` (bf16 by
               default -> native MXU path, half the weight bytes).
      b_fused: (1, H) f32 row, bx + bh pre-added.
    """
    H, I = w_x2h.shape
    assert w_h2h.shape == (H, I), "x2h and h2h must have matching shapes"
    assert b_x2h.shape == (H,) and b_h2h.shape == (H,)
    w_fused = jnp.concatenate(
        [jnp.asarray(w_x2h).T, jnp.asarray(w_h2h).T], axis=0
    ).astype(compute_dtype)                                   # (2I, H)
    b_fused = (jnp.asarray(b_x2h) + jnp.asarray(b_h2h)).astype(jnp.float32)
    b_fused = b_fused.reshape(1, H)                           # (1, H)
    return w_fused, b_fused


@functools.partial(jax.jit, static_argnames=("nonlinearity",))
def rnn_cell_forward(x, hx, w_fused, b_fused, *, nonlinearity="tanh"):
    """x: (B, I), hx: (B, I); w_fused: (2I, H), b_fused: (1, H)."""
    B, I = x.shape
    assert hx.shape[0] == B
    # h2h is nn.Linear(input_size, hidden_size) -> hx must have I columns,
    # i.e. the module is only consistent when hidden_size == input_size.
    assert hx.shape[1] == I, "RNNCell requires hidden_size == input_size (h2h is defined over input_size)"
    twoI, H = w_fused.shape
    assert twoI == 2 * I
    assert b_fused.shape == (1, H)

    compute_dtype = w_fused.dtype
    # Fuse the two matmul LHS operands into one (B, 2I) slab (single MXU op).
    xh = jnp.concatenate([x, hx], axis=1).astype(compute_dtype)

    kernel = functools.partial(_rnn_cell_kernel, nonlinearity=nonlinearity)

    # Whole problem fits in VMEM -> single-shot pallas_call, full-array blocks,
    # no grid / dimension_semantics boilerplate.
    return pl.pallas_call(
        kernel,
        out_shape=jax.ShapeDtypeStruct((B, H), x.dtype),
    )(xh, w_fused, b_fused)


def _reference(x, hx, w_x2h, b_x2h, w_h2h, b_h2h, nonlinearity="tanh"):
    pre = x @ w_x2h.T + b_x2h + hx @ w_h2h.T + b_h2h
    return jnp.tanh(pre) if nonlinearity == "tanh" else jnp.maximum(pre, 0.0)


if __name__ == "__main__":
    # Small, deterministic problem.  hidden_size == input_size is required by
    # the module's h2h definition; H = 128 gives a lane-dense output (no
    # masked partial stores), B = 8 fills one f32 sublane group.
    B = 8
    INPUT_SIZE = 128
    HIDDEN_SIZE = 128

    key = jax.random.PRNGKey(0)
    k_x, k_h, k_wx, k_bx, k_wh, k_bh = jax.random.split(key, 6)

    x = jax.random.normal(k_x, (B, INPUT_SIZE), dtype=jnp.float32)
    hx = jax.random.normal(k_h, (B, HIDDEN_SIZE), dtype=jnp.float32)

    # PyTorch nn.Linear default init: U(-1/sqrt(fan_in), 1/sqrt(fan_in)).
    bound = 1.0 / (INPUT_SIZE ** 0.5)
    w_x2h = jax.random.uniform(k_wx, (HIDDEN_SIZE, INPUT_SIZE), jnp.float32, -bound, bound)
    b_x2h = jax.random.uniform(k_bx, (HIDDEN_SIZE,), jnp.float32, -bound, bound)
    w_h2h = jax.random.uniform(k_wh, (HIDDEN_SIZE, INPUT_SIZE), jnp.float32, -bound, bound)
    b_h2h = jax.random.uniform(k_bh, (HIDDEN_SIZE,), jnp.float32, -bound, bound)

    # One-time parameter prep (fused, pre-transposed, bf16 MXU operands).
    w_fused, b_fused = prepare_rnn_cell_params(w_x2h, b_x2h, w_h2h, b_h2h)

    hy = rnn_cell_forward(x, hx, w_fused, b_fused, nonlinearity="tanh")
    hy = jax.block_until_ready(hy)

    ref = _reference(x, hx, w_x2h, b_x2h, w_h2h, b_h2h, nonlinearity="tanh")
    assert hy.shape == (B, HIDDEN_SIZE)
    # bf16 matmul operands (f32 accumulate) vs. pure-f32 reference -> compare
    # with a tolerance appropriate to the bf16 mantissa.
    err = float(jnp.max(jnp.abs(hy - ref)))
    assert jnp.allclose(hy, ref, atol=5e-2, rtol=5e-2), f"max abs err {err}"

    print("KERNEL_OK")
</pallas_src>

<mosaic_0001>
module attributes {stable_mosaic.version = 11 : i64} {
  func.func @_rnn_cell_kernel(%arg0: memref<8x256xbf16, #tpu.memory_space<vmem>>, %arg1: memref<256x128xbf16, #tpu.memory_space<vmem>>, %arg2: memref<1x128xf32, #tpu.memory_space<vmem>>, %arg3: memref<8x128xf32, #tpu.memory_space<vmem>>) attributes {dimension_semantics = [], scalar_prefetch = 0 : i64, scratch_operands = 0 : i64, tpu.core_type = #tpu.core_type<tc>} {
    %c0 = arith.constant 0 : index
    %c0_0 = arith.constant 0 : index
    %0 = vector.load %arg0[%c0, %c0_0] : memref<8x256xbf16, #tpu.memory_space<vmem>>, vector<8x256xbf16>
    %c0_1 = arith.constant 0 : index
    %c0_2 = arith.constant 0 : index
    %1 = vector.load %arg1[%c0_1, %c0_2] : memref<256x128xbf16, #tpu.memory_space<vmem>>, vector<256x128xbf16>
    %cst = arith.constant dense<0.000000e+00> : vector<8x128xf32>
    %2 = tpu.matmul %0, %1, %cst {dimension_numbers = #tpu.dot_dimension_numbers<[1], [0], [0], [1], [0, 0, 1, 1], [], []>} : vector<8x256xbf16>, vector<256x128xbf16>, vector<8x128xf32> -> vector<8x128xf32>
    %c0_3 = arith.constant 0 : index
    %c0_4 = arith.constant 0 : index
    %3 = vector.load %arg2[%c0_3, %c0_4] : memref<1x128xf32, #tpu.memory_space<vmem>>, vector<1x128xf32>
    %4 = vector.broadcast %3 : vector<1x128xf32> to vector<8x128xf32>
    %5 = arith.addf %2, %4 : vector<8x128xf32>
    %6 = math.tanh %5 : vector<8x128xf32>
    %c0_5 = arith.constant 0 : index
    %c0_6 = arith.constant 0 : index
    %7 = vector.load %arg3[%c0_5, %c0_6] : memref<8x128xf32, #tpu.memory_space<vmem>>, vector<8x128xf32>
    tpu.vector_store %arg3[%c0_5, %c0_6], %6 {strides = array<i32>} : memref<8x128xf32, #tpu.memory_space<vmem>>, vector<8x128xf32>,
    return
  }
}

</mosaic_0001>

<llo_original>
// kernel: rnn_cell_forward.1
$region0: #{rnn_cell_forward.1}
  #allocation0 [shape = 'u32[]', space=smem, size = 0x4, offset = 0x4, fixed_abs, tag = 'smem constant byte address 0x4 - core index']
  #allocation1 [shape = 'u32[144,128]{1,0:T(1,128)}', space=vmem, size = 0x12000, scoped, tag = 'internal scratch']
  %s0 = inlined_call_operand.vmem [shape: bf16[8,256], index: 0, kind: input, shape index: {}]
  %s1 = inlined_call_operand.hbm [shape: bf16[256,128], index: 1, kind: input, shape index: {}]
  %s2 = inlined_call_operand.vmem [shape: f32[1,128], index: 2, kind: input, shape index: {}]
  %s3 = inlined_call_operand.hbm [shape: f32[8,128], index: 3, kind: output, shape index: {}]
  %s4 = sld [smem:[#allocation0]]
  $region26: #{rnn_cell_forward.1} parent=0
    _
  %s6 = ssub.s32 1, %s4
  %s7 = scalar_select 0, %s6, %s4
  $region1: #{rnn_cell_forward.1} parent=0
    #allocation2 [shape = 'u8[65536]{0}', space=vmem, size = 0x10000, scoped, tag = 'input window, operand 1, single buffered']
    #allocation3 [shape = 's32[1]{0}', space=sflag, size = 0x4, scoped, tag = 'scoped memory for rnn_cell_forward.1']
    #allocation4 [shape = 's32[1]{0}', space=sflag, size = 0x4, scoped, tag = 'scoped memory for rnn_cell_forward.1']
    #allocation5 [shape = 'u8[4096]{0}', space=vmem, size = 0x1000, scoped, tag = 'output window, operand 0, single buffered']
    %8 = vsyncpa [#allocation3], 0
    %9 = vsyncpa [#allocation4], 0
    // Predicated region
    $region2: #{rnn_cell_forward.1} parent=1 // pred_check
      _
    $region3: #{rnn_cell_forward.1} parent=1 // pred_check_branch
      %11 = sbr.rel (0) target = $region5
    $region4: #{rnn_cell_forward.1} parent=1 // pred_region
      _
    $region5: #{rnn_cell_forward.1} parent=1 // pred_fallthru
      _
    // Predicated region
    $region6: #{rnn_cell_forward.1} parent=1 // pred_check
      _
    $region7: #{rnn_cell_forward.1} parent=1 // pred_check_branch
      %13 = sbr.rel (0) target = $region9
    $region8: #{rnn_cell_forward.1} parent=1 // pred_region
      %s15 = ssub.s32 2048, 2048
      %16 = vsyncadd [#allocation3], %s15
      %s17 = sshll.u32 [#allocation2], 4
      %s18 = int_to_ptr.vmem [resolvable:$true] %s17
      %23 = dma.hbm_to_vmem [thread:$0]  %s1, 2048, %s18, [#allocation3], 64, 64, 4
    $region9: #{rnn_cell_forward.1} parent=1 // pred_fallthru
      _
    // Predicated region
    $region10: #{rnn_cell_forward.1} parent=1 // pred_check
      _
    $region11: #{rnn_cell_forward.1} parent=1 // pred_check_branch
      %25 = sbr.rel (0) target = $region13
    $region12: #{rnn_cell_forward.1} parent=1 // pred_region
      _
    $region13: #{rnn_cell_forward.1} parent=1 // pred_fallthru
      _
    // Predicated region
    $region14: #{rnn_cell_forward.1} parent=1 // pred_check
      _
    $region15: #{rnn_cell_forward.1} parent=1 // pred_check_branch
      %27 = sbr.rel (0) target = $region17
    $region16: #{rnn_cell_forward.1} parent=1 // pred_region
      %28 = dma.done [#allocation3], 2048
    $region17: #{rnn_cell_forward.1} parent=1 // pred_fallthru
      _
    %v30 = vld [vmem:[%s0] sm:$0xff]
    %v31 = vld [vmem:[#allocation2] sm:$0xf]
    %v32 = vld [vmem:[#allocation2 + $0x4] sm:$0xf]
    %v33 = vld [vmem:[#allocation2 + $0x8] sm:$0xf]
    %v34 = vld [vmem:[#allocation2 + $0xc] sm:$0xf]
    %v35 = vld [vmem:[#allocation2 + $0x10] sm:$0xf]
    %v36 = vld [vmem:[#allocation2 + $0x14] sm:$0xf]
    %v37 = vld [vmem:[#allocation2 + $0x18] sm:$0xf]
    %v38 = vld [vmem:[#allocation2 + $0x1c] sm:$0xf]
    %v39 = vld [vmem:[#allocation2 + $0x20] sm:$0xf]
    %v40 = vld [vmem:[#allocation2 + $0x24] sm:$0xf]
    %v41 = vld [vmem:[#allocation2 + $0x28] sm:$0xf]
    %v42 = vld [vmem:[#allocation2 + $0x2c] sm:$0xf]
    %v43 = vld [vmem:[#allocation2 + $0x30] sm:$0xf]
    %v44 = vld [vmem:[#allocation2 + $0x34] sm:$0xf]
    %v45 = vld [vmem:[#allocation2 + $0x38] sm:$0xf]
    %v46 = vld [vmem:[#allocation2 + $0x3c] sm:$0xf]
    %v47 = vld [vmem:[#allocation2 + $0x40] sm:$0xf]
    %v48 = vld [vmem:[#allocation2 + $0x44] sm:$0xf]
    %v49 = vld [vmem:[#allocation2 + $0x48] sm:$0xf]
    %v50 = vld [vmem:[#allocation2 + $0x4c] sm:$0xf]
    %v51 = vld [vmem:[#allocation2 + $0x50] sm:$0xf]
    %v52 = vld [vmem:[#allocation2 + $0x54] sm:$0xf]
    %v53 = vld [vmem:[#allocation2 + $0x58] sm:$0xf]
    %v54 = vld [vmem:[#allocation2 + $0x5c] sm:$0xf]
    %v55 = vld [vmem:[#allocation2 + $0x60] sm:$0xf]
    %v56 = vld [vmem:[#allocation2 + $0x64] sm:$0xf]
    %v57 = vld [vmem:[#allocation2 + $0x68] sm:$0xf]
    %v58 = vld [vmem:[#allocation2 + $0x6c] sm:$0xf]
    %v59 = vld [vmem:[#allocation2 + $0x70] sm:$0xf]
    %v60 = vld [vmem:[#allocation2 + $0x74] sm:$0xf]
    %v61 = vld [vmem:[#allocation2 + $0x78] sm:$0xf]
    %v62 = vld [vmem:[#allocation2 + $0x7c] sm:$0xf]
    %v63 = vld [vmem:[%s2] sm:$0x1]
    %v65 = vlaneseq
    %v66 = vshrl.u32 %v65, 7
    %v67 = vsub.s32 0, %v66
    %v68 = vrot.slane %v63, %v67
    %v71 = vunpack.c.l.b16 %v30
    %v72 = vunpack.c.h.b16 %v30
    %v73 = vpack.c.b16 %v71, %v71
    %v74 = vpack.c.b16 %v72, %v72
    %v109 = vunpack.c.l.b16 %v31
    %v110 = vunpack.c.l.b16 %v32
    %v111 = vunpack.c.l.b16 %v33
    %v112 = vunpack.c.l.b16 %v34
    %v113 = vunpack.c.l.b16 %v35
    %v114 = vunpack.c.l.b16 %v36
    %v115 = vunpack.c.l.b16 %v37
    %v116 = vunpack.c.l.b16 %v38
    %v117 = vunpack.c.l.b16 %v39
    %v118 = vunpack.c.l.b16 %v40
    %v119 = vunpack.c.l.b16 %v41
    %v120 = vunpack.c.l.b16 %v42
    %v121 = vunpack.c.l.b16 %v43
    %v122 = vunpack.c.l.b16 %v44
    %v123 = vunpack.c.l.b16 %v45
    %v124 = vunpack.c.l.b16 %v46
    %v125 = vunpack.c.l.b16 %v47
    %v126 = vunpack.c.l.b16 %v48
    %v127 = vunpack.c.l.b16 %v49
    %v128 = vunpack.c.l.b16 %v50
    %v129 = vunpack.c.l.b16 %v51
    %v130 = vunpack.c.l.b16 %v52
    %v131 = vunpack.c.l.b16 %v53
    %v132 = vunpack.c.l.b16 %v54
    %v133 = vunpack.c.l.b16 %v55
    %v134 = vunpack.c.l.b16 %v56
    %v135 = vunpack.c.l.b16 %v57
    %v136 = vunpack.c.l.b16 %v58
    %v137 = vunpack.c.l.b16 %v59
    %v138 = vunpack.c.l.b16 %v60
    %v139 = vunpack.c.l.b16 %v61
    %v140 = vunpack.c.l.b16 %v62
    %v141 = vpack.c.b16 %v110, %v109
    %v142 = vpack.c.b16 %v112, %v111
    %v143 = vpack.c.b16 %v114, %v113
    %v144 = vpack.c.b16 %v116, %v115
    %v145 = vpack.c.b16 %v118, %v117
    %v146 = vpack.c.b16 %v120, %v119
    %v147 = vpack.c.b16 %v122, %v121
    %v148 = vpack.c.b16 %v124, %v123
    %v149 = vpack.c.b16 %v126, %v125
    %v150 = vpack.c.b16 %v128, %v127
    %v151 = vpack.c.b16 %v130, %v129
    %v152 = vpack.c.b16 %v132, %v131
    %v153 = vpack.c.b16 %v134, %v133
    %v154 = vpack.c.b16 %v136, %v135
    %v155 = vpack.c.b16 %v138, %v137
    %v156 = vpack.c.b16 %v140, %v139
    %173 = vmatprep.subr.bf16.mxu0 0
    %174 = vmatpush1.bf16.msra.mxu0 %v148
    %175 = vmatprep.subr.bf16.mxu0 0
    %176 = vmatpush1.bf16.msra.mxu0 %v147
    %177 = vmatprep.subr.bf16.mxu0 0
    %178 = vmatpush1.bf16.msra.mxu0 %v146
    %179 = vmatprep.subr.bf16.mxu0 0
    %180 = vmatpush1.bf16.msra.mxu0 %v145
    %181 = vmatprep.subr.bf16.mxu0 0
    %182 = vmatpush1.bf16.msra.mxu0 %v144
    %183 = vmatprep.subr.bf16.mxu0 0
    %184 = vmatpush1.bf16.msra.mxu0 %v143
    %185 = vmatprep.subr.bf16.mxu0 0
    %186 = vmatpush1.bf16.msra.mxu0 %v142
    %187 = vmatprep.subr.bf16.mxu0 0
    %188 = vmatpush1.bf16.msra.mxu0 %v141
    %189 = vmatprep.subr.bf16.mxu0 0
    %190 = vmatpush2.bf16.msra.mxu0 %v156
    %191 = vmatprep.subr.bf16.mxu0 0
    %192 = vmatpush2.bf16.msra.mxu0 %v155
    %193 = vmatprep.subr.bf16.mxu0 0
    %194 = vmatpush2.bf16.msra.mxu0 %v154
    %195 = vmatprep.subr.bf16.mxu0 0
    %196 = vmatpush2.bf16.msra.mxu0 %v153
    %197 = vmatprep.subr.bf16.mxu0 0
    %198 = vmatpush2.bf16.msra.mxu0 %v152
    %199 = vmatprep.subr.bf16.mxu0 0
    %200 = vmatpush2.bf16.msra.mxu0 %v151
    %201 = vmatprep.subr.bf16.mxu0 0
    %202 = vmatpush2.bf16.msra.mxu0 %v150
    %203 = vmatprep.subr.bf16.mxu0 0
    %204 = vmatpush2.bf16.msra.mxu0 %v149
    %205 = vmatprep.mubr.bf16.mxu0 %v74
    %206 = vmatmul.mubr.bf16.gmra.mxu0 %v73
    %v207 = vpop.f32.mrf.mxu0
    %v208 = vadd.f32 %v68, %v207
    %v209 = vpop.f32.mrf.mxu0
    %v210 = vpop.f32.mrf.mxu0
    %v211 = vpop.f32.mrf.mxu0
    %212 = vdwg.mxu0
    %v213 = vtanh.pop %v208
    %214 = vst [vmem:[#allocation5] sm:$0xff] %v213
    // Predicated region
    $region18: #{rnn_cell_forward.1} parent=1 // pred_check
      _
    $region19: #{rnn_cell_forward.1} parent=1 // pred_check_branch
      %216 = sbr.rel (0) target = $region21
    $region20: #{rnn_cell_forward.1} parent=1 // pred_region
      %s218 = ssub.s32 128, 128
      %219 = vsyncadd [#allocation4], %s218
      %s221 = sshll.u32 [#allocation5], 4
      %s222 = int_to_ptr.vmem [resolvable:$true] %s221
      %224 = dma.vmem_to_hbm [thread:$0]  %s222, 128, %s3, [#allocation4]
    $region21: #{rnn_cell_forward.1} parent=1 // pred_fallthru
      _
    // Predicated region
    $region22: #{rnn_cell_forward.1} parent=1 // pred_check
      _
    $region23: #{rnn_cell_forward.1} parent=1 // pred_check_branch
      %226 = sbr.rel (0) target = $region25
    $region24: #{rnn_cell_forward.1} parent=1 // pred_region
      %227 = dma.done [#allocation4], 128
    $region25: #{rnn_cell_forward.1} parent=1 // pred_fallthru
      _
    %228 = vsyncpa [#allocation3], 1
    %229 = vsyncpa [#allocation4], 1

</llo_original>
